<compile_context>
chip_gen: v7x
topology: tpu7x:2x2x1
jax: 0.10.0
libtpu: 0.0.40
codegen_flags: <defaults>
</compile_context>

<pallas_src>
import jax
import jax.numpy as jnp
from jax.experimental import pallas as pl
from jax.experimental.pallas import tpu as pltpu


def _round_up(n, m):
    return ((n + m - 1) // m) * m


def _cdiv(a, b):
    return (a + b - 1) // b


def kan_kernel(x_ref, w_ref, b_ref, o_ref):
    # x_ref: (tb, d_in_pad)      f32 input batch tile (streams along the inner grid axis)
    # w_ref: (3*d_in_pad, tn)    folded Chebyshev weights for orders 1..3 (bf16/f32);
    #                            VMEM-resident across the whole inner (batch) sweep
    # b_ref: (1, tn)             bias = sum_i W[0, i, :]  (order-0 / ones term), f32
    # o_ref: (tb, tn)
    x = jnp.tanh(x_ref[...].astype(jnp.float32))      # tanh + polynomial math in f32
    x_sq = x * x
    wd = w_ref.dtype
    t1 = x.astype(wd)                                  # T1  (cast before concat: half bytes)
    t2 = (2.0 * x_sq - 1.0).astype(wd)                 # T2
    t3 = (4.0 * x * x_sq - 3.0 * x).astype(wd)         # T3
    # Single MXU pass with lane-aligned K = 3*d_in_pad (d_in_pad % 128 == 0, so the
    # concatenate is a clean lane-tile placement, not a cross-lane relayout).
    t_cat = jnp.concatenate([t1, t2, t3], axis=-1)
    acc = jnp.dot(t_cat, w_ref[...], preferred_element_type=jnp.float32)
    o_ref[...] = (acc + b_ref[...]).astype(o_ref.dtype)


def kan_layer(x, weights, *, tb=256, tn=512, use_bf16=True,
              vmem_budget_bytes=24 * 1024 * 1024):
    """Chebyshev KAN forward: out[b,d] = sum_{n,i} T_n(tanh(x)[b,i]) * W[n,i,d]."""
    B, d_input = x.shape
    n_poly, d_in_w, d_output = weights.shape
    assert n_poly == 4 and d_in_w == d_input, "kernel specialized for n_order=3"

    w_itemsize = 2 if use_bf16 else 4

    # ---- K (contraction) alignment: pad d_input to a lane multiple of 128. -------
    # Padded x columns give tanh(0)=0 -> T2=-1 != 0, but the matching weight rows
    # are zero-padded, so padded columns contribute exactly nothing.
    d_in_pad = _round_up(d_input, 128)

    w32 = weights.astype(jnp.float32)
    # T0 == 1 -> its contribution is a batch-independent bias (saves 25% of MXU work).
    bias = jnp.sum(w32[0], axis=0)[None, :]                        # (1, d_output), f32
    w123 = w32[1:]                                                 # (3, d_input, d_output)
    if d_in_pad != d_input:
        w123 = jnp.pad(w123, ((0, 0), (0, d_in_pad - d_input), (0, 0)))
        x = jnp.pad(x, ((0, 0), (0, d_in_pad - d_input)))
    # Row index k = m*d_in_pad + i matches t_cat = [T1 | T2 | T3] built in the kernel.
    w_folded = w123.reshape(3 * d_in_pad, d_output)
    if use_bf16:
        w_folded = w_folded.astype(jnp.bfloat16)                   # halves DMA, 2x MXU rate

    # ---- Tile selection: sublane/lane aligned, VMEM-budgeted, minimal over-pad. ---
    B8 = _round_up(B, 8)
    dout128 = _round_up(d_output, 128)
    tb_eff = min(_round_up(tb, 8), B8)
    tn_eff = min(_round_up(tn, 128), dout128)

    def vmem_estimate(tb_e, tn_e):
        w_b = 2 * (3 * d_in_pad) * tn_e * w_itemsize    # double-buffered weight slice
        x_b = 2 * tb_e * d_in_pad * 4                   # double-buffered x tile
        o_b = 2 * tb_e * tn_e * 4                       # double-buffered out tile
        t_b = tb_e * (3 * d_in_pad) * w_itemsize        # t_cat intermediate
        b_b = 2 * 8 * tn_e * 4                          # bias tile (sublane-padded)
        return w_b + x_b + o_b + t_b + b_b

    # Keep double-buffering alive even on v7x's 64 MiB VMEM / 32 MiB scoped default.
    while vmem_estimate(tb_eff, tn_eff) > vmem_budget_bytes and tn_eff > 128:
        tn_eff = max(128, _round_up(tn_eff // 2, 128))
    while vmem_estimate(tb_eff, tn_eff) > vmem_budget_bytes and tb_eff > 8:
        tb_eff = max(8, _round_up(tb_eff // 2, 8))

    # Rebalance tiles over the padded extents so we never pad by ~a whole tile.
    n_bt = _cdiv(B8, tb_eff)
    tb_eff = _round_up(_cdiv(B8, n_bt), 8)
    B_pad = n_bt * tb_eff
    n_ot = _cdiv(dout128, tn_eff)
    tn_eff = _round_up(_cdiv(dout128, n_ot), 128)
    d_out_pad = n_ot * tn_eff

    if B_pad != B:
        x = jnp.pad(x, ((0, B_pad - B), (0, 0)))
    if d_out_pad != d_output:
        w_folded = jnp.pad(w_folded, ((0, 0), (0, d_out_pad - d_output)))
        bias = jnp.pad(bias, ((0, 0), (0, d_out_pad - d_output)))

    # Grid: (output-column tiles, batch tiles). Batch is the INNERMOST axis, so the
    # weight slice and bias (index_maps constant in i) stay VMEM-resident while x
    # streams; weights are read from HBM exactly once in total.
    grid = (n_ot, n_bt)

    out = pl.pallas_call(
        kan_kernel,
        out_shape=jax.ShapeDtypeStruct((B_pad, d_out_pad), x.dtype),
        grid_spec=pltpu.PrefetchScalarGridSpec(
            num_scalar_prefetch=0,
            grid=grid,
            in_specs=[
                # x: streams along the inner (batch) axis, full padded d_input per tile
                pl.BlockSpec((tb_eff, d_in_pad), lambda j, i: (i, 0)),
                # folded weights: sliced along d_output, constant over the inner axis
                pl.BlockSpec((3 * d_in_pad, tn_eff), lambda j, i: (0, j)),
                # bias: sliced along d_output, constant over the inner axis
                pl.BlockSpec((1, tn_eff), lambda j, i: (0, j)),
            ],
            out_specs=pl.BlockSpec((tb_eff, tn_eff), lambda j, i: (i, j)),
        ),
        compiler_params=pltpu.CompilerParams(
            # Output-column tiles are independent -> megacore shards them on v7x;
            # no-op on single-TC v5e/v6e.
            dimension_semantics=("parallel", "parallel"),
            vmem_limit_bytes=32 * 1024 * 1024,
        ),
    )(x, w_folded, bias)

    return out[:B, :d_output]


def kan_layer_ref(x, weights):
    xt = jnp.tanh(x.astype(jnp.float32))
    x_sq = xt * xt
    polys = jnp.stack(
        [jnp.ones_like(xt), xt, 2.0 * x_sq - 1.0, 4.0 * xt * x_sq - 3.0 * xt],
        axis=-1,
    )  # (B, d_input, 4)
    return jnp.einsum("bin,nid->bd", polys, weights.astype(jnp.float32)).astype(x.dtype)


if __name__ == "__main__":
    # Small shapes consistent with the module's forward: x is (batch, d_input)
    B, d_input, d_output, n_order = 16, 32, 64, 3

    key = jax.random.PRNGKey(0)
    kx, kw = jax.random.split(key)
    x = jax.random.normal(kx, (B, d_input), dtype=jnp.float32)
    # torch.randn(n_order+1, d_input, d_output) * 0.02, deterministic in-script
    weights = jax.random.normal(kw, (n_order + 1, d_input, d_output),
                                dtype=jnp.float32) * 0.02

    out = kan_layer(x, weights)
    out = jax.block_until_ready(out)

    ref = kan_layer_ref(x, weights)
    assert out.shape == (B, d_output)
    # bf16 matmul operands (f32 accumulate): tolerance loosened vs pure-f32 path.
    assert jnp.allclose(out, ref, atol=2e-2, rtol=2e-2)

    print("KERNEL_OK")
</pallas_src>

<mosaic_0001>
module attributes {stable_mosaic.version = 11 : i64} {
  func.func @kan_kernel(%arg0: i32, %arg1: i32, %arg2: memref<16x128xf32, #tpu.memory_space<vmem>>, %arg3: memref<384x128xbf16, #tpu.memory_space<vmem>>, %arg4: memref<1x128xf32, #tpu.memory_space<vmem>>, %arg5: memref<16x128xf32, #tpu.memory_space<vmem>>) attributes {dimension_semantics = [#tpu.dimension_semantics<parallel>, #tpu.dimension_semantics<parallel>], iteration_bounds = array<i64: 1, 1>, scalar_prefetch = 0 : i64, scratch_operands = 0 : i64, tpu.core_type = #tpu.core_type<tc>, window_params = [{transform_indices = @transform_0, window_bounds = array<i64: 16, 128>}, {transform_indices = @transform_1, window_bounds = array<i64: 384, 128>}, {transform_indices = @transform_2, window_bounds = array<i64: 1, 128>}, {transform_indices = @transform_3, window_bounds = array<i64: 16, 128>}]} {
    %c0 = arith.constant 0 : index
    %c0_0 = arith.constant 0 : index
    %0 = vector.load %arg2[%c0, %c0_0] : memref<16x128xf32, #tpu.memory_space<vmem>>, vector<16x128xf32>
    %1 = math.tanh %0 : vector<16x128xf32>
    %2 = arith.mulf %1, %1 : vector<16x128xf32>
    %3 = arith.truncf %1 : vector<16x128xf32> to vector<16x128xbf16>
    %cst = arith.constant 2.000000e+00 : f32
    %4 = vector.broadcast %cst : f32 to vector<16x128xf32>
    %5 = arith.mulf %4, %2 : vector<16x128xf32>
    %cst_1 = arith.constant 1.000000e+00 : f32
    %6 = vector.broadcast %cst_1 : f32 to vector<16x128xf32>
    %7 = arith.subf %5, %6 : vector<16x128xf32>
    %8 = arith.truncf %7 : vector<16x128xf32> to vector<16x128xbf16>
    %cst_2 = arith.constant 4.000000e+00 : f32
    %9 = vector.broadcast %cst_2 : f32 to vector<16x128xf32>
    %10 = arith.mulf %9, %1 : vector<16x128xf32>
    %11 = arith.mulf %10, %2 : vector<16x128xf32>
    %cst_3 = arith.constant 3.000000e+00 : f32
    %12 = vector.broadcast %cst_3 : f32 to vector<16x128xf32>
    %13 = arith.mulf %12, %1 : vector<16x128xf32>
    %14 = arith.subf %11, %13 : vector<16x128xf32>
    %15 = arith.truncf %14 : vector<16x128xf32> to vector<16x128xbf16>
    %16 = tpu.concatenate %3, %8, %15 in 1 : vector<16x128xbf16>, vector<16x128xbf16>, vector<16x128xbf16> -> vector<16x384xbf16>
    %c0_4 = arith.constant 0 : index
    %c0_5 = arith.constant 0 : index
    %17 = vector.load %arg3[%c0_4, %c0_5] : memref<384x128xbf16, #tpu.memory_space<vmem>>, vector<384x128xbf16>
    %cst_6 = arith.constant dense<0.000000e+00> : vector<16x128xf32>
    %18 = tpu.matmul %16, %17, %cst_6 {dimension_numbers = #tpu.dot_dimension_numbers<[1], [0], [0], [1], [0, 0, 1, 1], [], []>} : vector<16x384xbf16>, vector<384x128xbf16>, vector<16x128xf32> -> vector<16x128xf32>
    %c0_7 = arith.constant 0 : index
    %c0_8 = arith.constant 0 : index
    %19 = vector.load %arg4[%c0_7, %c0_8] : memref<1x128xf32, #tpu.memory_space<vmem>>, vector<1x128xf32>
    %20 = vector.broadcast %19 : vector<1x128xf32> to vector<16x128xf32>
    %21 = arith.addf %18, %20 : vector<16x128xf32>
    %c0_9 = arith.constant 0 : index
    %c0_10 = arith.constant 0 : index
    %22 = vector.load %arg5[%c0_9, %c0_10] : memref<16x128xf32, #tpu.memory_space<vmem>>, vector<16x128xf32>
    tpu.vector_store %arg5[%c0_9, %c0_10], %21 {strides = array<i32>} : memref<16x128xf32, #tpu.memory_space<vmem>>, vector<16x128xf32>,
    return
  }
  func.func @transform_0(%arg0: i32, %arg1: i32) -> (i32, i32) {
    %c0_i32 = arith.constant 0 : i32
    %c0_i32_0 = arith.constant 0 : i32
    return %arg1, %c0_i32 : i32, i32
  }
  func.func @transform_1(%arg0: i32, %arg1: i32) -> (i32, i32) {
    %c0_i32 = arith.constant 0 : i32
    %c0_i32_0 = arith.constant 0 : i32
    return %c0_i32, %arg0 : i32, i32
  }
  func.func @transform_2(%arg0: i32, %arg1: i32) -> (i32, i32) {
    %c0_i32 = arith.constant 0 : i32
    %c0_i32_0 = arith.constant 0 : i32
    return %c0_i32, %arg0 : i32, i32
  }
  func.func @transform_3(%arg0: i32, %arg1: i32) -> (i32, i32) {
    %c0_i32 = arith.constant 0 : i32
    return %arg1, %arg0 : i32, i32
  }
}

</mosaic_0001>

<llo_original>
// kernel: tpu_custom_call.1
$region0: #{tpu_custom_call.1}
  #allocation0 [shape = 'u32[]', space=smem, size = 0x4, offset = 0x4, fixed_abs, tag = 'smem constant byte address 0x4 - core index']
  #allocation1 [shape = 'u32[144,128]{1,0:T(1,128)}', space=vmem, size = 0x12000, scoped, tag = 'internal scratch']
  %s0 = inlined_call_operand.hbm [shape: f32[16,128], index: 0, kind: input, shape index: {}]
  %s1 = inlined_call_operand.hbm [shape: bf16[384,128], index: 1, kind: input, shape index: {}]
  %s2 = inlined_call_operand.vmem [shape: f32[1,128], index: 2, kind: input, shape index: {}]
  %s3 = inlined_call_operand.hbm [shape: f32[16,128], index: 3, kind: output, shape index: {}]
  %s4 = sld [smem:[#allocation0]]
  $region30: #{tpu_custom_call.1} parent=0
    _
  %s6 = ssub.s32 1, %s4
  %s7 = scalar_select 0, %s6, %s4
  $region1: #{tpu_custom_call.1} parent=0
    #allocation2 [shape = 'u8[8192]{0}', space=vmem, size = 0x2000, scoped, tag = 'input window, operand 0, single buffered']
    #allocation3 [shape = 's32[1]{0}', space=sflag, size = 0x4, scoped, tag = 'scoped memory for tpu_custom_call.1']
    #allocation4 [shape = 's32[1]{0}', space=sflag, size = 0x4, scoped, tag = 'scoped memory for tpu_custom_call.1']
    #allocation5 [shape = 'u8[98304]{0}', space=vmem, size = 0x18000, scoped, tag = 'input window, operand 1, single buffered']
    #allocation6 [shape = 's32[1]{0}', space=sflag, size = 0x4, scoped, tag = 'scoped memory for tpu_custom_call.1']
    #allocation7 [shape = 'u8[8192]{0}', space=vmem, size = 0x2000, scoped, tag = 'output window, operand 0, single buffered']
    %8 = vsyncpa [#allocation3], 0
    %9 = vsyncpa [#allocation6], 0
    %10 = vsyncpa [#allocation4], 0
    // Predicated region
    $region2: #{tpu_custom_call.1} parent=1 // pred_check
      _
    $region3: #{tpu_custom_call.1} parent=1 // pred_check_branch
      %12 = sbr.rel (0) target = $region5
    $region4: #{tpu_custom_call.1} parent=1 // pred_region
      %s14 = ssub.s32 256, 256
      %15 = vsyncadd [#allocation3], %s14
      %s16 = sshll.u32 [#allocation2], 4
      %s17 = int_to_ptr.vmem [resolvable:$true] %s16
      %22 = dma.hbm_to_vmem [thread:$0]  %s0, 256, %s17, [#allocation3], 128, 128, 8
    $region5: #{tpu_custom_call.1} parent=1 // pred_fallthru
      _
    // Predicated region
    $region6: #{tpu_custom_call.1} parent=1 // pred_check
      _
    $region7: #{tpu_custom_call.1} parent=1 // pred_check_branch
      %24 = sbr.rel (0) target = $region9
    $region8: #{tpu_custom_call.1} parent=1 // pred_region
      %s26 = ssub.s32 3072, 3072
      %27 = vsyncadd [#allocation6], %s26
      %s28 = sshll.u32 [#allocation5], 4
      %s29 = int_to_ptr.vmem [resolvable:$true] %s28
      %34 = dma.hbm_to_vmem [thread:$0]  %s1, 3072, %s29, [#allocation6], 64, 64, 4
    $region9: #{tpu_custom_call.1} parent=1 // pred_fallthru
      _
    // Predicated region
    $region10: #{tpu_custom_call.1} parent=1 // pred_check
      _
    $region11: #{tpu_custom_call.1} parent=1 // pred_check_branch
      %36 = sbr.rel (0) target = $region13
    $region12: #{tpu_custom_call.1} parent=1 // pred_region
      _
    $region13: #{tpu_custom_call.1} parent=1 // pred_fallthru
      _
    // Predicated region
    $region14: #{tpu_custom_call.1} parent=1 // pred_check
      _
    $region15: #{tpu_custom_call.1} parent=1 // pred_check_branch
      %38 = sbr.rel (0) target = $region17
    $region16: #{tpu_custom_call.1} parent=1 // pred_region
      %39 = dma.done [#allocation3], 256
    $region17: #{tpu_custom_call.1} parent=1 // pred_fallthru
      _
    // Predicated region
    $region18: #{tpu_custom_call.1} parent=1 // pred_check
      _
    $region19: #{tpu_custom_call.1} parent=1 // pred_check_branch
      %41 = sbr.rel (0) target = $region21
    $region20: #{tpu_custom_call.1} parent=1 // pred_region
      %42 = dma.done [#allocation6], 3072
    $region21: #{tpu_custom_call.1} parent=1 // pred_fallthru
      _
    %v44 = vld [vmem:[#allocation2] sm:$0xff]
    %v45 = vld [vmem:[#allocation2 + $0x8] sm:$0xff]
    %v46 = vtanh.pop %v44
    %v47 = vtanh.pop %v45
    %v48 = vmul.f32 %v46, %v46
    %v49 = vmul.f32 %v47, %v47
    %v50 = vpack.c.bf16 %v47, %v46
    %v51 = vmul.f32 %v48, 2.0
    %v52 = vmul.f32 %v49, 2.0
    %v53 = vsub.f32 %v51, 1.0
    %v54 = vsub.f32 %v52, 1.0
    %v55 = vpack.c.bf16 %v54, %v53
    %v56 = vmul.f32 %v46, 4.0
    %v57 = vmul.f32 %v47, 4.0
    %v58 = vmul.f32 %v56, %v48
    %v59 = vmul.f32 %v57, %v49
    %v60 = vmul.f32 %v46, 3.0
    %v61 = vmul.f32 %v47, 3.0
    %v62 = vsub.f32 %v58, %v60
    %v63 = vsub.f32 %v59, %v61
    %v64 = vpack.c.bf16 %v63, %v62
    %v65 = vld [vmem:[#allocation5] sm:$0xf]
    %v66 = vld [vmem:[#allocation5 + $0x4] sm:$0xf]
    %v67 = vld [vmem:[#allocation5 + $0x8] sm:$0xf]
    %v68 = vld [vmem:[#allocation5 + $0xc] sm:$0xf]
    %v69 = vld [vmem:[#allocation5 + $0x10] sm:$0xf]
    %v70 = vld [vmem:[#allocation5 + $0x14] sm:$0xf]
    %v71 = vld [vmem:[#allocation5 + $0x18] sm:$0xf]
    %v72 = vld [vmem:[#allocation5 + $0x1c] sm:$0xf]
    %v73 = vld [vmem:[#allocation5 + $0x20] sm:$0xf]
    %v74 = vld [vmem:[#allocation5 + $0x24] sm:$0xf]
    %v75 = vld [vmem:[#allocation5 + $0x28] sm:$0xf]
    %v76 = vld [vmem:[#allocation5 + $0x2c] sm:$0xf]
    %v77 = vld [vmem:[#allocation5 + $0x30] sm:$0xf]
    %v78 = vld [vmem:[#allocation5 + $0x34] sm:$0xf]
    %v79 = vld [vmem:[#allocation5 + $0x38] sm:$0xf]
    %v80 = vld [vmem:[#allocation5 + $0x3c] sm:$0xf]
    %v81 = vld [vmem:[#allocation5 + $0x40] sm:$0xf]
    %v82 = vld [vmem:[#allocation5 + $0x44] sm:$0xf]
    %v83 = vld [vmem:[#allocation5 + $0x48] sm:$0xf]
    %v84 = vld [vmem:[#allocation5 + $0x4c] sm:$0xf]
    %v85 = vld [vmem:[#allocation5 + $0x50] sm:$0xf]
    %v86 = vld [vmem:[#allocation5 + $0x54] sm:$0xf]
    %v87 = vld [vmem:[#allocation5 + $0x58] sm:$0xf]
    %v88 = vld [vmem:[#allocation5 + $0x5c] sm:$0xf]
    %v89 = vld [vmem:[#allocation5 + $0x60] sm:$0xf]
    %v90 = vld [vmem:[#allocation5 + $0x64] sm:$0xf]
    %v91 = vld [vmem:[#allocation5 + $0x68] sm:$0xf]
    %v92 = vld [vmem:[#allocation5 + $0x6c] sm:$0xf]
    %v93 = vld [vmem:[#allocation5 + $0x70] sm:$0xf]
    %v94 = vld [vmem:[#allocation5 + $0x74] sm:$0xf]
    %v95 = vld [vmem:[#allocation5 + $0x78] sm:$0xf]
    %v96 = vld [vmem:[#allocation5 + $0x7c] sm:$0xf]
    %v97 = vld [vmem:[#allocation5 + $0x80] sm:$0xf]
    %v98 = vld [vmem:[#allocation5 + $0x84] sm:$0xf]
    %v99 = vld [vmem:[#allocation5 + $0x88] sm:$0xf]
    %v100 = vld [vmem:[#allocation5 + $0x8c] sm:$0xf]
    %v101 = vld [vmem:[#allocation5 + $0x90] sm:$0xf]
    %v102 = vld [vmem:[#allocation5 + $0x94] sm:$0xf]
    %v103 = vld [vmem:[#allocation5 + $0x98] sm:$0xf]
    %v104 = vld [vmem:[#allocation5 + $0x9c] sm:$0xf]
    %v105 = vld [vmem:[#allocation5 + $0xa0] sm:$0xf]
    %v106 = vld [vmem:[#allocation5 + $0xa4] sm:$0xf]
    %v107 = vld [vmem:[#allocation5 + $0xa8] sm:$0xf]
    %v108 = vld [vmem:[#allocation5 + $0xac] sm:$0xf]
    %v109 = vld [vmem:[#allocation5 + $0xb0] sm:$0xf]
    %v110 = vld [vmem:[#allocation5 + $0xb4] sm:$0xf]
    %v111 = vld [vmem:[#allocation5 + $0xb8] sm:$0xf]
    %v112 = vld [vmem:[#allocation5 + $0xbc] sm:$0xf]
    %v113 = vld [vmem:[%s2] sm:$0x1]
    %v115 = vlaneseq
    %v116 = vshrl.u32 %v115, 7
    %v117 = vsub.s32 0, %v116
    %v118 = vrot.slane %v113, %v117
    %v168 = vunpack.c.l.b16 %v65
    %v169 = vunpack.c.l.b16 %v66
    %v170 = vunpack.c.l.b16 %v67
    %v171 = vunpack.c.l.b16 %v68
    %v172 = vunpack.c.l.b16 %v69
    %v173 = vunpack.c.l.b16 %v70
    %v174 = vunpack.c.l.b16 %v71
    %v175 = vunpack.c.l.b16 %v72
    %v176 = vunpack.c.l.b16 %v73
    %v177 = vunpack.c.l.b16 %v74
    %v178 = vunpack.c.l.b16 %v75
    %v179 = vunpack.c.l.b16 %v76
    %v180 = vunpack.c.l.b16 %v77
    %v181 = vunpack.c.l.b16 %v78
    %v182 = vunpack.c.l.b16 %v79
    %v183 = vunpack.c.l.b16 %v80
    %v184 = vunpack.c.l.b16 %v81
    %v185 = vunpack.c.l.b16 %v82
    %v186 = vunpack.c.l.b16 %v83
    %v187 = vunpack.c.l.b16 %v84
    %v188 = vunpack.c.l.b16 %v85
    %v189 = vunpack.c.l.b16 %v86
    %v190 = vunpack.c.l.b16 %v87
    %v191 = vunpack.c.l.b16 %v88
    %v192 = vunpack.c.l.b16 %v89
    %v193 = vunpack.c.l.b16 %v90
    %v194 = vunpack.c.l.b16 %v91
    %v195 = vunpack.c.l.b16 %v92
    %v196 = vunpack.c.l.b16 %v93
    %v197 = vunpack.c.l.b16 %v94
    %v198 = vunpack.c.l.b16 %v95
    %v199 = vunpack.c.l.b16 %v96
    %v200 = vunpack.c.l.b16 %v97
    %v201 = vunpack.c.l.b16 %v98
    %v202 = vunpack.c.l.b16 %v99
    %v203 = vunpack.c.l.b16 %v100
    %v204 = vunpack.c.l.b16 %v101
    %v205 = vunpack.c.l.b16 %v102
    %v206 = vunpack.c.l.b16 %v103
    %v207 = vunpack.c.l.b16 %v104
    %v208 = vunpack.c.l.b16 %v105
    %v209 = vunpack.c.l.b16 %v106
    %v210 = vunpack.c.l.b16 %v107
    %v211 = vunpack.c.l.b16 %v108
    %v212 = vunpack.c.l.b16 %v109
    %v213 = vunpack.c.l.b16 %v110
    %v214 = vunpack.c.l.b16 %v111
    %v215 = vunpack.c.l.b16 %v112
    %v216 = vpack.c.b16 %v169, %v168
    %v217 = vpack.c.b16 %v171, %v170
    %v218 = vpack.c.b16 %v173, %v172
    %v219 = vpack.c.b16 %v175, %v174
    %v220 = vpack.c.b16 %v177, %v176
    %v221 = vpack.c.b16 %v179, %v178
    %v222 = vpack.c.b16 %v181, %v180
    %v223 = vpack.c.b16 %v183, %v182
    %v224 = vpack.c.b16 %v185, %v184
    %v225 = vpack.c.b16 %v187, %v186
    %v226 = vpack.c.b16 %v189, %v188
    %v227 = vpack.c.b16 %v191, %v190
    %v228 = vpack.c.b16 %v193, %v192
    %v229 = vpack.c.b16 %v195, %v194
    %v230 = vpack.c.b16 %v197, %v196
    %v231 = vpack.c.b16 %v199, %v198
    %v232 = vpack.c.b16 %v201, %v200
    %v233 = vpack.c.b16 %v203, %v202
    %v234 = vpack.c.b16 %v205, %v204
    %v235 = vpack.c.b16 %v207, %v206
    %v236 = vpack.c.b16 %v209, %v208
    %v237 = vpack.c.b16 %v211, %v210
    %v238 = vpack.c.b16 %v213, %v212
    %v239 = vpack.c.b16 %v215, %v214
    %264 = vmatprep.subr.bf16.mxu0 0
    %265 = vmatpush1.bf16.msra.mxu0 %v216
    %266 = vmatprep.subr.bf16.mxu0 0
    %267 = vmatpush1.bf16.msra.mxu0 %v217
    %268 = vmatprep.subr.bf16.mxu0 0
    %269 = vmatpush1.bf16.msra.mxu0 %v218
    %270 = vmatprep.subr.bf16.mxu0 0
    %271 = vmatpush1.bf16.msra.mxu0 %v219
    %272 = vmatprep.subr.bf16.mxu0 0
    %273 = vmatpush1.bf16.msra.mxu0 %v220
    %274 = vmatprep.subr.bf16.mxu0 0
    %275 = vmatpush1.bf16.msra.mxu0 %v221
    %276 = vmatprep.subr.bf16.mxu0 0
    %277 = vmatpush1.bf16.msra.mxu0 %v222
    %278 = vmatprep.subr.bf16.mxu0 0
    %279 = vmatpush1.bf16.msra.mxu0 %v223
    %280 = vmatprep.subr.bf16.mxu0 0
    %281 = vmatpush1.bf16.msra.mxu0 %v224
    %282 = vmatprep.subr.bf16.mxu0 0
    %283 = vmatpush1.bf16.msra.mxu0 %v225
    %284 = vmatprep.subr.bf16.mxu0 0
    %285 = vmatpush1.bf16.msra.mxu0 %v226
    %286 = vmatprep.subr.bf16.mxu0 0
    %287 = vmatpush1.bf16.msra.mxu0 %v227
    %288 = vmatprep.subr.bf16.mxu0 0
    %289 = vmatpush1.bf16.msra.mxu0 %v228
    %290 = vmatprep.subr.bf16.mxu0 0
    %291 = vmatpush1.bf16.msra.mxu0 %v229
    %292 = vmatprep.subr.bf16.mxu0 0
    %293 = vmatpush1.bf16.msra.mxu0 %v230
    %294 = vmatprep.subr.bf16.mxu0 0
    %295 = vmatpush1.bf16.msra.mxu0 %v231
    %296 = vmatprep.mubr.bf16.mxu0 %v55
    %297 = vmatmul.mubr.bf16.gmra.mrb[0].mxu0 %v50
    %v298 = vpop.f32.mrb[0].mxu0
    %v299 = vadd.f32 %v118, %v298
    %v300 = vpop.f32.mrb[0].mxu0
    %v301 = vpop.f32.mrb[0].mxu0
    %v302 = vadd.f32 %v118, %v301
    %v303 = vpop.f32.mrb[0].mxu0
    %304 = vdwg.mxu0
    %305 = vmatprep.subr.bf16.mxu0 0
    %306 = vmatpush1.bf16.msra.mxu0 %v232
    %307 = vmatprep.subr.bf16.mxu0 0
    %308 = vmatpush1.bf16.msra.mxu0 %v233
    %309 = vmatprep.subr.bf16.mxu0 0
    %310 = vmatpush1.bf16.msra.mxu0 %v234
    %311 = vmatprep.subr.bf16.mxu0 0
    %312 = vmatpush1.bf16.msra.mxu0 %v235
    %313 = vmatprep.subr.bf16.mxu0 0
    %314 = vmatpush1.bf16.msra.mxu0 %v236
    %315 = vmatprep.subr.bf16.mxu0 0
    %316 = vmatpush1.bf16.msra.mxu0 %v237
    %317 = vmatprep.subr.bf16.mxu0 0
    %318 = vmatpush1.bf16.msra.mxu0 %v238
    %319 = vmatprep.subr.bf16.mxu0 0
    %320 = vmatpush1.bf16.msra.mxu0 %v239
    %321 = vmatprep.subr.bf16.mxu0 0
    %322 = vmatpush1.bf16.msra.mxu0 0
    %323 = vmatprep.subr.bf16.mxu0 0
    %324 = vmatpush1.bf16.msra.mxu0 0
    %325 = vmatprep.subr.bf16.mxu0 0
    %326 = vmatpush1.bf16.msra.mxu0 0
    %327 = vmatprep.subr.bf16.mxu0 0
    %328 = vmatpush1.bf16.msra.mxu0 0
    %329 = vmatprep.subr.bf16.mxu0 0
    %330 = vmatpush1.bf16.msra.mxu0 0
    %331 = vmatprep.subr.bf16.mxu0 0
    %332 = vmatpush1.bf16.msra.mxu0 0
    %333 = vmatprep.subr.bf16.mxu0 0
    %334 = vmatpush1.bf16.msra.mxu0 0
    %335 = vmatprep.subr.bf16.mxu0 0
    %336 = vmatpush1.bf16.msra.mxu0 0
    %337 = vmatprep.mubr.bf16.mxu0 0
    %338 = vmatmul.mubr.bf16.gmra.mrb[0].mxu0 %v64
    %v339 = vpop.f32.mrb[0].mxu0
    %v340 = vadd.f32 %v299, %v339
    %v341 = vpop.f32.mrb[0].mxu0
    %v342 = vpop.f32.mrb[0].mxu0
    %v343 = vadd.f32 %v302, %v342
    %v344 = vpop.f32.mrb[0].mxu0
    %345 = vdwg.mxu0
    %346 = vst [vmem:[#allocation7] sm:$0xff] %v340
    %347 = vst [vmem:[#allocation7 + $0x8] sm:$0xff] %v343
    // Predicated region
    $region22: #{tpu_custom_call.1} parent=1 // pred_check
      _
    $region23: #{tpu_custom_call.1} parent=1 // pred_check_branch
      %349 = sbr.rel (0) target = $region25
    $region24: #{tpu_custom_call.1} parent=1 // pred_region
      %s351 = ssub.s32 256, 256
      %352 = vsyncadd [#allocation4], %s351
      %s353 = sshll.u32 [#allocation7], 4
      %s354 = int_to_ptr.vmem [resolvable:$true] %s353
      %359 = dma.vmem_to_hbm [thread:$0]  %s354, 256, %s3, [#allocation4], 128, 128, 8
    $region25: #{tpu_custom_call.1} parent=1 // pred_fallthru
      _
    // Predicated region
    $region26: #{tpu_custom_call.1} parent=1 // pred_check
      _
    $region27: #{tpu_custom_call.1} parent=1 // pred_check_branch
      %361 = sbr.rel (0) target = $region29
    $region28: #{tpu_custom_call.1} parent=1 // pred_region
      %362 = dma.done [#allocation4], 256
    $region29: #{tpu_custom_call.1} parent=1 // pred_fallthru
      _
    %363 = vsyncpa [#allocation3], 1
    %364 = vsyncpa [#allocation6], 1
    %365 = vsyncpa [#allocation4], 1

</llo_original>
